<compile_context>
chip_gen: v7x
topology: tpu7x:2x2x1
jax: 0.10.0
libtpu: 0.0.40
codegen_flags: <defaults>
</compile_context>

<pallas_src>
import functools

import jax
import jax.numpy as jnp
from jax.experimental import pallas as pl
from jax.experimental.pallas import tpu as pltpu


def _round_up(x: int, m: int) -> int:
    return ((x + m - 1) // m) * m


# ----------------------------------------------------------------------------
# Fused InfoNCE kernel
# ----------------------------------------------------------------------------
def _infonce_kernel(ref_ref, pos_ref, neg_ref, out_ref, m_scr, l_scr, *,
                    n_actual, m_actual, m_pad, tn, tm, inv_temp, neg_resident):
    i = pl.program_id(0)          # N-block index  ("parallel")
    j = pl.program_id(1)          # M-block index  (reduction, innermost, "arbitrary")
    nj = pl.num_programs(1)

    @pl.when(j == 0)
    def _init():
        m_scr[...] = jnp.full((tn, 1), -jnp.inf, dtype=jnp.float32)
        l_scr[...] = jnp.zeros((tn, 1), dtype=jnp.float32)

    # Fold temperature into ref: tn*d multiplies instead of tn*tm per step.
    r = ref_ref[...] * inv_temp                       # (tn, d), native dtype

    if neg_resident:
        # Whole negatives matrix lives in VMEM (fetched once for the grid);
        # slice the current chunk of negatives out of the resident block.
        start = pl.multiple_of(j * tm, tm)
        ng = neg_ref[pl.ds(start, tm), :]             # (tm, d)
    else:
        ng = neg_ref[...]                             # streamed (tm, d) block

    # s[n, m] = <ref_n, neg_m> / T   (MXU, f32 accumulate)
    s = jax.lax.dot_general(r, ng, (((1,), (1,)), ((), ())),
                            preferred_element_type=jnp.float32)

    if m_pad != m_actual:
        # Static: only the last M block contains padded negatives; mask them so
        # they never win the max / contribute to the sum-of-exp.
        col = jax.lax.broadcasted_iota(jnp.int32, s.shape, 1)
        valid_in_last = col < (tm - (m_pad - m_actual))
        keep = jnp.logical_or(j != nj - 1, valid_in_last)
        s = jnp.where(keep, s, -jnp.inf)

    # Online max / sum-of-exp (flash-style) over the negatives axis.
    m_prev = m_scr[...]
    m_new = jnp.maximum(m_prev, jnp.max(s, axis=1, keepdims=True))
    alpha = jnp.exp(m_prev - m_new)
    p = jnp.exp(s - m_new)
    l_scr[...] = alpha * l_scr[...] + jnp.sum(p, axis=1, keepdims=True)
    m_scr[...] = m_new

    @pl.when(j == nj - 1)
    def _finalize():
        # Row-wise positive similarity (r already carries the 1/T scale).
        pos_dist = jnp.sum(r.astype(jnp.float32) * pos_ref[...].astype(jnp.float32),
                           axis=1, keepdims=True)     # (tn, 1)
        c = m_scr[...]                                # (tn, 1)
        row = jax.lax.broadcasted_iota(jnp.int32, c.shape, 0) + i * tn
        valid = row < n_actual                        # mask padded batch rows
        align_sum = jnp.sum(jnp.where(valid, c - pos_dist, 0.0))
        unif_sum = jnp.sum(jnp.where(valid, jnp.log(l_scr[...]), 0.0))
        # Per-N-block partials in one lane-dense (8, 128) tile:
        #   [0, 0] = sum(align),  [0, 1] = sum(uniform),  rest 0.
        lane = jax.lax.broadcasted_iota(jnp.int32, (8, 128), 1)
        sub = jax.lax.broadcasted_iota(jnp.int32, (8, 128), 0)
        first = sub == 0
        tile = jnp.where(first & (lane == 0), align_sum,
                         jnp.where(first & (lane == 1), unif_sum, 0.0))
        out_ref[...] = tile.astype(out_ref.dtype)


# ----------------------------------------------------------------------------
# Wrapper
# ----------------------------------------------------------------------------
@functools.partial(jax.jit, static_argnames=("temperature",))
def reference_infonce(ref, pos, neg, *, temperature=1.0):
    """Pallas forward of ReferenceInfoNCE: returns (align + uniform, align, uniform)."""
    n, d = ref.shape
    m, d2 = neg.shape
    assert pos.shape == (n, d) and d2 == d

    # Keep native floating dtype for the HBM->VMEM stream and the MXU
    # (bf16 stays bf16); accumulators / exp / log / partials stay f32.
    dtype = jnp.result_type(ref.dtype, pos.dtype, neg.dtype)
    if not jnp.issubdtype(dtype, jnp.floating):
        dtype = jnp.float32
    ref = ref.astype(dtype)
    pos = pos.astype(dtype)
    neg = neg.astype(dtype)
    itemsize = jnp.dtype(dtype).itemsize

    # ---------------- tile / residency selection ----------------
    n8 = _round_up(n, 8)
    tm = min(512, _round_up(m, 8))
    m_pad = _round_up(m, tm)

    # Make negatives fully VMEM-resident (single HBM fetch) whenever the
    # (double-buffered) block fits a budget that is safe on v7x's 64 MiB VMEM.
    neg_resident = 2 * m_pad * d * itemsize <= 24 * 1024 * 1024

    # A large tn cuts how many times neg is re-streamed from HBM (only matters
    # when it is not resident).  Keep >= 2 N blocks so megacore / both v7x
    # TensorCores get work whenever the batch allows it.
    tn = min(256 if neg_resident else 512, n8)
    if n8 // tn < 2 and n8 >= 16:
        tn = _round_up(n8 // 2, 8)
    # Guard the ref/pos block size against very large feature dims.
    while 2 * tn * d * itemsize > 8 * 1024 * 1024 and tn > 8:
        tn = max(8, _round_up(tn // 2, 8))
    n_pad = _round_up(n, tn)

    n_blocks = n_pad // tn
    m_blocks = m_pad // tm

    # -------- cheap row padding only (no D blow-up, no copy when unneeded) ----
    ref_p = ref if n_pad == n else jnp.pad(ref, ((0, n_pad - n), (0, 0)))
    pos_p = pos if n_pad == n else jnp.pad(pos, ((0, n_pad - n), (0, 0)))
    neg_p = neg if m_pad == m else jnp.pad(neg, ((0, m_pad - m), (0, 0)))

    if neg_resident:
        # Constant index map -> the whole negatives matrix is DMA'd once and
        # stays resident across the entire grid.
        neg_spec = pl.BlockSpec((m_pad, d), lambda i, j: (0, 0))
    else:
        # Stream (tm, d) blocks over j; deepen the pipeline to hide HBM latency.
        try:
            neg_spec = pl.BlockSpec((tm, d), lambda i, j: (j, 0),
                                    pipeline_mode=pl.Buffered(3))
        except (TypeError, AttributeError):   # older jax without pipeline_mode
            neg_spec = pl.BlockSpec((tm, d), lambda i, j: (j, 0))

    kernel = functools.partial(
        _infonce_kernel,
        n_actual=n, m_actual=m, m_pad=m_pad, tn=tn, tm=tm,
        inv_temp=1.0 / float(temperature), neg_resident=neg_resident)

    f32 = jnp.float32
    partial_tiles = pl.pallas_call(
        kernel,
        out_shape=jax.ShapeDtypeStruct((n_blocks * 8, 128), f32),
        grid_spec=pltpu.PrefetchScalarGridSpec(
            num_scalar_prefetch=0,
            grid=(n_blocks, m_blocks),
            in_specs=[
                pl.BlockSpec((tn, d), lambda i, j: (i, 0)),   # ref (resident per i)
                pl.BlockSpec((tn, d), lambda i, j: (i, 0)),   # pos (resident per i)
                neg_spec,                                     # neg (resident or streamed)
            ],
            out_specs=pl.BlockSpec((8, 128), lambda i, j: (i, 0)),
            scratch_shapes=[
                pltpu.VMEM((tn, 1), f32),   # running max  m
                pltpu.VMEM((tn, 1), f32),   # running sum-of-exp  l
            ],
        ),
        compiler_params=pltpu.CompilerParams(
            dimension_semantics=("parallel", "arbitrary"),
            vmem_limit_bytes=48 * 1024 * 1024,   # safe on v7x (64 MiB) and below
        ),
    )(ref_p, pos_p, neg_p)

    # Tiny final reduction over N blocks (two scalars per block).
    partial_tiles = partial_tiles.reshape(n_blocks, 8, 128)
    align = jnp.sum(partial_tiles[:, 0, 0]) / n
    uniform = jnp.sum(partial_tiles[:, 0, 1]) / n
    return align + uniform, align, uniform


class ReferenceInfoNCEPallas:
    """JAX/Pallas port of cebra's ReferenceInfoNCE (forward pass).

    Note: torch's `with torch.no_grad()` detach of the max `c` only affects the
    backward pass; the forward computation implemented here is identical.
    """

    def __init__(self, temperature: float = 1.0):
        self.temperature = float(temperature)

    def __call__(self, ref, pos, neg):
        return reference_infonce(ref, pos, neg, temperature=self.temperature)


# ----------------------------------------------------------------------------
# Demo / smoke test
# ----------------------------------------------------------------------------
if __name__ == "__main__":
    key = jax.random.PRNGKey(0)

    # (n, m, d, temperature): covers the resident single-M-block path and the
    # multi-M-block + row/column padding path.
    configs = [
        (16, 24, 32, 0.5),
        (20, 600, 24, 1.0),
    ]

    for idx, (n, m, d, temperature) in enumerate(configs):
        k_r, k_p, k_n, key = jax.random.split(key, 4)
        ref = jax.random.normal(k_r, (n, d), dtype=jnp.float32)
        pos = jax.random.normal(k_p, (n, d), dtype=jnp.float32)
        neg = jax.random.normal(k_n, (m, d), dtype=jnp.float32)

        model = ReferenceInfoNCEPallas(temperature=temperature)
        loss, align, uniform = jax.block_until_ready(model(ref, pos, neg))

        # Pure-JAX reference mirroring ref_dot_similarity + ref_infonce.
        pos_dist = jnp.sum(ref * pos, axis=1) / temperature
        neg_dist = (ref @ neg.T) / temperature
        c = jnp.max(neg_dist, axis=1, keepdims=True)
        align_ref = jnp.mean(-(pos_dist - c[:, 0]))
        uniform_ref = jnp.mean(jax.scipy.special.logsumexp(neg_dist - c, axis=1))
        loss_ref = align_ref + uniform_ref

        assert jnp.allclose(align, align_ref, atol=1e-4, rtol=1e-4), (idx, align, align_ref)
        assert jnp.allclose(uniform, uniform_ref, atol=1e-4, rtol=1e-4), (idx, uniform, uniform_ref)
        assert jnp.allclose(loss, loss_ref, atol=1e-4, rtol=1e-4), (idx, loss, loss_ref)

    print("KERNEL_OK")
</pallas_src>

<mosaic_0001>
module attributes {stable_mosaic.version = 11 : i64} {
  func.func @_infonce_kernel(%arg0: i32, %arg1: i32, %arg2: memref<8x32xf32, #tpu.memory_space<vmem>>, %arg3: memref<8x32xf32, #tpu.memory_space<vmem>>, %arg4: memref<24x32xf32, #tpu.memory_space<vmem>>, %arg5: memref<8x128xf32, #tpu.memory_space<vmem>>, %arg6: memref<8x1xf32, #tpu.memory_space<vmem>>, %arg7: memref<8x1xf32, #tpu.memory_space<vmem>>) attributes {dimension_semantics = [#tpu.dimension_semantics<parallel>, #tpu.dimension_semantics<arbitrary>], iteration_bounds = array<i64: 2, 1>, scalar_prefetch = 0 : i64, scratch_operands = 2 : i64, tpu.core_type = #tpu.core_type<tc>, window_params = [{transform_indices = @transform_0, window_bounds = array<i64: 8, 32>}, {transform_indices = @transform_1, window_bounds = array<i64: 8, 32>}, {pipeline_mode = #tpu.pipeline_mode<synchronous>, transform_indices = @transform_2, window_bounds = array<i64: 24, 32>}, {transform_indices = @transform_3, window_bounds = array<i64: 8, 128>}]} {
    %c0_i32 = arith.constant 0 : i32
    %0 = arith.cmpi eq, %arg1, %c0_i32 : i32
    %1 = arith.extui %0 : i1 to i32
    %c0_i32_0 = arith.constant 0 : i32
    %2 = arith.cmpi ne, %1, %c0_i32_0 : i32
    scf.if %2 {
      %cst_16 = arith.constant 0xFF800000 : f32
      %30 = vector.broadcast %cst_16 : f32 to vector<8x1xf32>
      %c0_17 = arith.constant 0 : index
      %c0_18 = arith.constant 0 : index
      %31 = vector.load %arg6[%c0_17, %c0_18] : memref<8x1xf32, #tpu.memory_space<vmem>>, vector<8x1xf32>
      tpu.vector_store %arg6[%c0_17, %c0_18], %30 {strides = array<i32>} : memref<8x1xf32, #tpu.memory_space<vmem>>, vector<8x1xf32>,
      %cst_19 = arith.constant 0.000000e+00 : f32
      %32 = vector.broadcast %cst_19 : f32 to vector<8x1xf32>
      %c0_20 = arith.constant 0 : index
      %c0_21 = arith.constant 0 : index
      %33 = vector.load %arg7[%c0_20, %c0_21] : memref<8x1xf32, #tpu.memory_space<vmem>>, vector<8x1xf32>
      tpu.vector_store %arg7[%c0_20, %c0_21], %32 {strides = array<i32>} : memref<8x1xf32, #tpu.memory_space<vmem>>, vector<8x1xf32>,
    } else {
    }
    %c0 = arith.constant 0 : index
    %c0_1 = arith.constant 0 : index
    %3 = vector.load %arg2[%c0, %c0_1] : memref<8x32xf32, #tpu.memory_space<vmem>>, vector<8x32xf32>
    %cst = arith.constant 2.000000e+00 : f32
    %4 = vector.broadcast %cst : f32 to vector<8x32xf32>
    %5 = arith.mulf %3, %4 : vector<8x32xf32>
    %c24_i32 = arith.constant 24 : i32
    %6 = arith.muli %arg1, %c24_i32 : i32
    %7 = tpu.assume_multiple %6, 24 : i32
    %8 = arith.index_cast %7 : i32 to index
    %c0_2 = arith.constant 0 : index
    %9 = vector.load %arg4[%8, %c0_2] : memref<24x32xf32, #tpu.memory_space<vmem>>, vector<24x32xf32>
    %cst_3 = arith.constant dense<0.000000e+00> : vector<8x24xf32>
    %10 = tpu.matmul %5, %9, %cst_3 {dimension_numbers = #tpu.dot_dimension_numbers<[1], [1], [0], [0], [0, 0, 1, 0], [], []>} : vector<8x32xf32>, vector<24x32xf32>, vector<8x24xf32> -> vector<8x24xf32>
    %c0_4 = arith.constant 0 : index
    %c0_5 = arith.constant 0 : index
    %11 = vector.load %arg6[%c0_4, %c0_5] : memref<8x1xf32, #tpu.memory_space<vmem>>, vector<8x1xf32>
    %cst_6 = arith.constant dense<0xFF800000> : vector<8xf32>
    %12 = vector.multi_reduction <maximumf>, %10, %cst_6 [1] : vector<8x24xf32> to vector<8xf32>
    %13 = vector.shape_cast %12 : vector<8xf32> to vector<8x1xf32>
    %14 = arith.maximumf %11, %13 : vector<8x1xf32>
    %15 = arith.subf %11, %14 : vector<8x1xf32>
    %16 = math.exp %15 : vector<8x1xf32>
    %17 = vector.broadcast %14 : vector<8x1xf32> to vector<8x24xf32>
    %18 = arith.subf %10, %17 : vector<8x24xf32>
    %19 = math.exp %18 : vector<8x24xf32>
    %c0_7 = arith.constant 0 : index
    %c0_8 = arith.constant 0 : index
    %20 = vector.load %arg7[%c0_7, %c0_8] : memref<8x1xf32, #tpu.memory_space<vmem>>, vector<8x1xf32>
    %21 = arith.mulf %16, %20 : vector<8x1xf32>
    %cst_9 = arith.constant dense<0.000000e+00> : vector<8xf32>
    %22 = vector.multi_reduction <add>, %19, %cst_9 [1] : vector<8x24xf32> to vector<8xf32>
    %23 = vector.shape_cast %22 : vector<8xf32> to vector<8x1xf32>
    %24 = arith.addf %21, %23 : vector<8x1xf32>
    %c0_10 = arith.constant 0 : index
    %c0_11 = arith.constant 0 : index
    %25 = vector.load %arg7[%c0_10, %c0_11] : memref<8x1xf32, #tpu.memory_space<vmem>>, vector<8x1xf32>
    tpu.vector_store %arg7[%c0_10, %c0_11], %24 {strides = array<i32>} : memref<8x1xf32, #tpu.memory_space<vmem>>, vector<8x1xf32>,
    %c0_12 = arith.constant 0 : index
    %c0_13 = arith.constant 0 : index
    %26 = vector.load %arg6[%c0_12, %c0_13] : memref<8x1xf32, #tpu.memory_space<vmem>>, vector<8x1xf32>
    tpu.vector_store %arg6[%c0_12, %c0_13], %14 {strides = array<i32>} : memref<8x1xf32, #tpu.memory_space<vmem>>, vector<8x1xf32>,
    %c0_i32_14 = arith.constant 0 : i32
    %27 = arith.cmpi eq, %arg1, %c0_i32_14 : i32
    %28 = arith.extui %27 : i1 to i32
    %c0_i32_15 = arith.constant 0 : i32
    %29 = arith.cmpi ne, %28, %c0_i32_15 : i32
    scf.if %29 {
      %c0_16 = arith.constant 0 : index
      %c0_17 = arith.constant 0 : index
      %30 = vector.load %arg3[%c0_16, %c0_17] : memref<8x32xf32, #tpu.memory_space<vmem>>, vector<8x32xf32>
      %31 = arith.mulf %5, %30 : vector<8x32xf32>
      %cst_18 = arith.constant dense<0.000000e+00> : vector<8xf32>
      %32 = vector.multi_reduction <add>, %31, %cst_18 [1] : vector<8x32xf32> to vector<8xf32>
      %33 = vector.shape_cast %32 : vector<8xf32> to vector<8x1xf32>
      %c0_19 = arith.constant 0 : index
      %c0_20 = arith.constant 0 : index
      %34 = vector.load %arg6[%c0_19, %c0_20] : memref<8x1xf32, #tpu.memory_space<vmem>>, vector<8x1xf32>
      %35 = tpu.iota {dimensions = array<i32: 0>} : vector<8x1xi32>
      %c8_i32 = arith.constant 8 : i32
      %36 = arith.muli %arg0, %c8_i32 : i32
      %37 = vector.broadcast %36 : i32 to vector<8x1xi32>
      %38 = arith.addi %35, %37 : vector<8x1xi32>
      %c16_i32 = arith.constant 16 : i32
      %39 = vector.broadcast %c16_i32 : i32 to vector<8x1xi32>
      %40 = arith.cmpi slt, %38, %39 : vector<8x1xi32>
      %41 = arith.subf %34, %33 : vector<8x1xf32>
      %cst_21 = arith.constant 0.000000e+00 : f32
      %42 = vector.broadcast %cst_21 : f32 to vector<8x1xf32>
      %43 = arith.select %40, %41, %42 : vector<8x1xi1>, vector<8x1xf32>
      %44 = vector.shape_cast %43 : vector<8x1xf32> to vector<1x8x1xf32>
      %cst_22 = arith.constant dense<0.000000e+00> : vector<1xf32>
      %45 = vector.multi_reduction <add>, %44, %cst_22 [1, 2] : vector<1x8x1xf32> to vector<1xf32>
      %46 = vector.shape_cast %45 : vector<1xf32> to vector<1x1x1xf32>
      %47 = vector.extract %46[0, 0, 0] : f32 from vector<1x1x1xf32>
      %c0_23 = arith.constant 0 : index
      %c0_24 = arith.constant 0 : index
      %48 = vector.load %arg7[%c0_23, %c0_24] : memref<8x1xf32, #tpu.memory_space<vmem>>, vector<8x1xf32>
      %49 = math.log %48 : vector<8x1xf32>
      %cst_25 = arith.constant 0.000000e+00 : f32
      %50 = vector.broadcast %cst_25 : f32 to vector<8x1xf32>
      %51 = arith.select %40, %49, %50 : vector<8x1xi1>, vector<8x1xf32>
      %52 = vector.shape_cast %51 : vector<8x1xf32> to vector<1x8x1xf32>
      %cst_26 = arith.constant dense<0.000000e+00> : vector<1xf32>
      %53 = vector.multi_reduction <add>, %52, %cst_26 [1, 2] : vector<1x8x1xf32> to vector<1xf32>
      %54 = vector.shape_cast %53 : vector<1xf32> to vector<1x1x1xf32>
      %55 = vector.extract %54[0, 0, 0] : f32 from vector<1x1x1xf32>
      %56 = tpu.iota {dimensions = array<i32: 1>} : vector<8x128xi32>
      %57 = tpu.iota {dimensions = array<i32: 0>} : vector<8x128xi32>
      %c0_i32_27 = arith.constant 0 : i32
      %58 = vector.broadcast %c0_i32_27 : i32 to vector<8x128xi32>
      %59 = arith.cmpi eq, %57, %58 : vector<8x128xi32>
      %c0_i32_28 = arith.constant 0 : i32
      %60 = vector.broadcast %c0_i32_28 : i32 to vector<8x128xi32>
      %61 = arith.cmpi eq, %56, %60 : vector<8x128xi32>
      %62 = arith.andi %59, %61 : vector<8x128xi1>
      %c1_i32 = arith.constant 1 : i32
      %63 = vector.broadcast %c1_i32 : i32 to vector<8x128xi32>
      %64 = arith.cmpi eq, %56, %63 : vector<8x128xi32>
      %65 = arith.andi %59, %64 : vector<8x128xi1>
      %cst_29 = arith.constant 0.000000e+00 : f32
      %66 = vector.broadcast %55 : f32 to vector<8x128xf32>
      %67 = vector.broadcast %cst_29 : f32 to vector<8x128xf32>
      %68 = arith.select %65, %66, %67 : vector<8x128xi1>, vector<8x128xf32>
      %69 = vector.broadcast %47 : f32 to vector<8x128xf32>
      %70 = arith.select %62, %69, %68 : vector<8x128xi1>, vector<8x128xf32>
      %c0_30 = arith.constant 0 : index
      %c0_31 = arith.constant 0 : index
      %71 = vector.load %arg5[%c0_30, %c0_31] : memref<8x128xf32, #tpu.memory_space<vmem>>, vector<8x128xf32>
      tpu.vector_store %arg5[%c0_30, %c0_31], %70 {strides = array<i32>} : memref<8x128xf32, #tpu.memory_space<vmem>>, vector<8x128xf32>,
    } else {
    }
    return
  }
  func.func @transform_0(%arg0: i32, %arg1: i32) -> (i32, i32) {
    %c0_i32 = arith.constant 0 : i32
    %c0_i32_0 = arith.constant 0 : i32
    return %arg0, %c0_i32 : i32, i32
  }
  func.func @transform_1(%arg0: i32, %arg1: i32) -> (i32, i32) {
    %c0_i32 = arith.constant 0 : i32
    %c0_i32_0 = arith.constant 0 : i32
    return %arg0, %c0_i32 : i32, i32
  }
  func.func @transform_2(%arg0: i32, %arg1: i32) -> (i32, i32) {
    %c0_i32 = arith.constant 0 : i32
    %c0_i32_0 = arith.constant 0 : i32
    %c0_i32_1 = arith.constant 0 : i32
    return %c0_i32, %c0_i32_0 : i32, i32
  }
  func.func @transform_3(%arg0: i32, %arg1: i32) -> (i32, i32) {
    %c0_i32 = arith.constant 0 : i32
    %c0_i32_0 = arith.constant 0 : i32
    return %arg0, %c0_i32 : i32, i32
  }
}

</mosaic_0001>

<llo_original>
// kernel: reference_infonce.1
$region0: #{reference_infonce.1}
  #allocation0 [shape = 'u32[]', space=smem, size = 0x4, offset = 0x4, fixed_abs, tag = 'smem constant byte address 0x4 - core index']
  #allocation1 [shape = 'u32[144,128]{1,0:T(1,128)}', space=vmem, size = 0x12000, scoped, tag = 'internal scratch']
  #allocation2 [shape = 'f32[8,1]{1,0:T(8,128)}', space=vmem, size = 0x1000, scoped, tag = 'scratch operand']
  #allocation3 [shape = 'f32[8,1]{1,0:T(8,128)}', space=vmem, size = 0x1000, scoped, tag = 'scratch operand']
  %s0 = inlined_call_operand.hbm [shape: f32[16,32], index: 0, kind: input, shape index: {}]
  %s1 = inlined_call_operand.hbm [shape: f32[16,32], index: 1, kind: input, shape index: {}]
  %s2 = inlined_call_operand.hbm [shape: f32[24,32], index: 2, kind: input, shape index: {}]
  %s3 = inlined_call_operand.vmem [shape: f32[16,128], index: 3, kind: output, shape index: {}]
  %s4 = sld [smem:[#allocation0]]
  $region65: #{reference_infonce.1} parent=0
    _
  %s6 = ssub.s32 1, %s4
  %s7 = scalar_select 0, %s6, %s4
  $region1: #{reference_infonce.1} parent=0
    #allocation4 [shape = 'u8[8192]{0}', space=vmem, size = 0x2000, scoped, tag = 'input window, operand 0']
    #allocation5 [shape = 's32[2]{0}', space=sflag, size = 0x8, scoped, tag = 'scoped memory for reference_infonce.1']
    #allocation6 [shape = 'u8[8192]{0}', space=vmem, size = 0x2000, scoped, tag = 'input window, operand 1']
    #allocation7 [shape = 's32[2]{0}', space=sflag, size = 0x8, scoped, tag = 'scoped memory for reference_infonce.1']
    #allocation8 [shape = 'u8[12288]{0}', space=vmem, size = 0x3000, scoped, tag = 'input window, operand 2, single buffered']
    %8 = vsyncpa [#allocation5], 0
    %s9 = scalar_lea.sflag [#allocation5], 1
    %10 = vsyncpa %s9, 0
    %11 = vsyncpa [#allocation7], 0
    %s12 = scalar_lea.sflag [#allocation7], 1
    %13 = vsyncpa %s12, 0
    loop: start=0, step=1, limit=4
    $region2: #{reference_infonce.1} parent=1 // loop_pre_header
      _
    $region3: #{reference_infonce.1} parent=1 // loop_header
      %s15 = sphi 0, %s19
      %p16 = scmp.ge.s32.totalorder %s15, 4
      %s22 = sphi 0, %s34
      %s23 = sphi 0, %s30
      %s24 = sphi 0, %s22
      %s25 = sphi 0, %s23
      %s26 = sphi 0, %s24
      %s27 = sphi 0, %s25
      %s37 = sphi 0, %s39
      %s40 = sphi 0, %s37
      %s41 = sphi 0, %s40
      %s57 = sphi 0, %s41
      %s63 = sphi 0, %s65
      %s66 = sphi 0, %s63
      %s67 = sphi 0, %s66
      %s83 = sphi 0, %s67
      %s87 = sphi 0, %s87
      %s89 = sphi 0, %s87
      %s90 = sphi 0, %s89
      %s104 = sphi 0, %s90
      %s110 = sphi 0, %s112
      %s113 = sphi 0, %s110
      %s114 = sphi 0, %s113
      %s130 = sphi 0, %s114
    $region4: #{reference_infonce.1} parent=1 // loop_header_branch
      %18 = sbr.rel (%p16) target = $region8
    $region5: #{reference_infonce.1} parent=1 // loop_body
      %s20 = ssub.s32 %s15, 1
      %s21 = ssub.s32 %s15, 2
      %s28 = sadd.s32 1, %s23
      %p29 = scmp.ge.s32.totalorder %s28, 1
      %s30 = scalar_select %p29, 0, %s28
      %s31 = sadd.s32 1, %s22
      %s32 = scalar_select %p29, %s31, %s22
      %p33 = scmp.ge.s32.totalorder %s32, 2
      %s34 = scalar_select %p33, 0, %s32
      %s35 = ssub.s32 %s22, %s34
      %p36 = scmp.eq.s32.totalorder %s35, 0
      %s38 = sadd.s32 %s37, 1
      %s39 = scalar_select %p36, %s37, %s38
      %p42 = pneg %p36
      %p43 = scmp.eq.s32.totalorder %s15, 1
      %p44 = por %p42, %p43
      %p45 = scmp.ne.s32.totalorder %s37, %s40
      %p46 = scmp.eq.s32.totalorder %s15, 0
      %p47 = por %p45, %p46
      %p48 = scmp.ne.s32.totalorder %s37, %s40
      %p49 = scmp.eq.s32.totalorder %s20, 1
      %p50 = por %p48, %p49
      %p51 = scmp.ne.s32.totalorder %s40, %s41
      %p52 = scmp.eq.s32.totalorder %s20, 0
      %p53 = por %p51, %p52
      %p54 = scmp.ne.s32.totalorder %s40, %s41
      %p55 = scmp.eq.s32.totalorder %s21, 1
      %p56 = por %p54, %p55
      %p58 = scmp.ne.s32.totalorder %s41, %s57
      %p59 = scmp.eq.s32.totalorder %s21, 0
      %p60 = por %p58, %p59
      %s61 = ssub.s32 %s22, %s34
      %p62 = scmp.eq.s32.totalorder %s61, 0
      %s64 = sadd.s32 %s63, 1
      %s65 = scalar_select %p62, %s63, %s64
      %p68 = pneg %p62
      %p69 = scmp.eq.s32.totalorder %s15, 1
      %p70 = por %p68, %p69
      %p71 = scmp.ne.s32.totalorder %s63, %s66
      %p72 = scmp.eq.s32.totalorder %s15, 0
      %p73 = por %p71, %p72
      %p74 = scmp.ne.s32.totalorder %s63, %s66
      %p75 = scmp.eq.s32.totalorder %s20, 1
      %p76 = por %p74, %p75
      %p77 = scmp.ne.s32.totalorder %s66, %s67
      %p78 = scmp.eq.s32.totalorder %s20, 0
      %p79 = por %p77, %p78
      %p80 = scmp.ne.s32.totalorder %s66, %s67
      %p81 = scmp.eq.s32.totalorder %s21, 1
      %p82 = por %p80, %p81
      %p84 = scmp.ne.s32.totalorder %s67, %s83
      %p85 = scmp.eq.s32.totalorder %s21, 0
      %p86 = por %p84, %p85
      %s88 = sadd.s32 %s87, 1
      %p91 = scmp.eq.s32.totalorder %s15, 1
      %p92 = scmp.ne.s32.totalorder %s87, %s89
      %p93 = scmp.eq.s32.totalorder %s15, 0
      %p94 = por %p92, %p93
      %p95 = scmp.ne.s32.totalorder %s87, %s89
      %p96 = scmp.eq.s32.totalorder %s20, 1
      %p97 = por %p95, %p96
      %p98 = scmp.ne.s32.totalorder %s89, %s90
      %p99 = scmp.eq.s32.totalorder %s20, 0
      %p100 = por %p98, %p99
      %p101 = scmp.ne.s32.totalorder %s89, %s90
      %p102 = scmp.eq.s32.totalorder %s21, 1
      %p103 = por %p101, %p102
      %p105 = scmp.ne.s32.totalorder %s90, %s104
      %p106 = scmp.eq.s32.totalorder %s21, 0
      %p107 = por %p105, %p106
      %s108 = ssub.s32 %s22, %s34
      %p109 = scmp.eq.s32.totalorder %s108, 0
      %s111 = sadd.s32 %s110, 1
      %s112 = scalar_select %p109, %s110, %s111
      %p115 = pneg %p109
      %p116 = scmp.eq.s32.totalorder %s15, 1
      %p117 = por %p115, %p116
      %p118 = scmp.ne.s32.totalorder %s110, %s113
      %p119 = scmp.eq.s32.totalorder %s15, 0
      %p120 = por %p118, %p119
      %p121 = scmp.ne.s32.totalorder %s110, %s113
      %p122 = scmp.eq.s32.totalorder %s20, 1
      %p123 = por %p121, %p122
      %p124 = scmp.ne.s32.totalorder %s113, %s114
      %p125 = scmp.eq.s32.totalorder %s20, 0
      %p126 = por %p124, %p125
      %p127 = scmp.ne.s32.totalorder %s113, %s114
      %p128 = scmp.eq.s32.totalorder %s21, 1
      %p129 = por %p127, %p128
      %p131 = scmp.ne.s32.totalorder %s114, %s130
      %p132 = scmp.eq.s32.totalorder %s21, 0
      %p133 = por %p131, %p132
      %p134 = scmp.le.s32.totalorder 1, %s15
      %p135 = scmp.lt.s32.totalorder %s15, 3
      %p136 = pnand %p134, %p135
      %p137 = pneg %p136
      // Predicated region
      $region9: #{reference_infonce.1} parent=5 // pred_check
        _
      $region10: #{reference_infonce.1} parent=5 // pred_check_branch
        %139 = sbr.rel (%p136) target = $region12
      $region11: #{reference_infonce.1} parent=5 // pred_region
        %s140 = ssub.s32 %s15, 1
        // Predicated region
        $region13: #{reference_infonce.1} parent=11 // pred_check
          %p141 = pneg %p100
        $region14: #{reference_infonce.1} parent=11 // pred_check_branch
          %143 = sbr.rel (%p141) target = $region16
        $region15: #{reference_infonce.1} parent=11 // pred_region
          %s145 = ssub.s32 384, 384
          %146 = vsyncadd [#allocation7], %s145
          %s147 = sshll.u32 [#allocation8], 4
          %s148 = int_to_ptr.vmem [resolvable:$true] %s147
          %153 = dma.hbm_to_vmem [thread:$0]  %s2, 384, %s148, [#allocation7], 128, 128, 8
        $region16: #{reference_infonce.1} parent=11 // pred_fallthru
          _
      $region12: #{reference_infonce.1} parent=5 // pred_fallthru
        _
      %p154 = scmp.lt.s32.totalorder %s15, 2
      // Predicated region
      $region17: #{reference_infonce.1} parent=5 // pred_check
        %p155 = pneg %p154
      $region18: #{reference_infonce.1} parent=5 // pred_check_branch
        %157 = sbr.rel (%p155) target = $region20
      $region19: #{reference_infonce.1} parent=5 // pred_region
        // Predicated region
        $region21: #{reference_infonce.1} parent=19 // pred_check
          %p158 = pneg %p47
        $region22: #{reference_infonce.1} parent=19 // pred_check_branch
          %160 = sbr.rel (%p158) target = $region24
        $region23: #{reference_infonce.1} parent=19 // pred_region
          %s161 = sand.u32 %s37, 1
          %s162 = scalar_lea.sflag [#allocation5], %s161
          %s163 = sand.u32 %s37, 1
          %s164 = smul.addr %s163, 8
          %s165 = scalar_lea.vmem [#allocation4], %s164
          %s167 = ssub.s32 128, 128
          %168 = vsyncadd %s162, %s167
          %s169 = smul.addr %s22, 128
          %s170 = scalar_lea.hbm %s0, %s169
          %s172 = sshll.u32 %s165, 4
          %s173 = int_to_ptr.vmem [resolvable:$true] %s172
          %175 = dma.hbm_to_vmem [thread:$0]  %s170, 128, %s173, %s162
        $region24: #{reference_infonce.1} parent=19 // pred_fallthru
          _
        // Predicated region
        $region25: #{reference_infonce.1} parent=19 // pred_check
          %p176 = pneg %p73
        $region26: #{reference_infonce.1} parent=19 // pred_check_branch
          %178 = sbr.rel (%p176) target = $region28
        $region27: #{reference_infonce.1} parent=19 // pred_region
          %s179 = sand.u32 %s15, 1
          %s180 = scalar_lea.sflag [#allocation7], %s179
          %s181 = sand.u32 %s63, 1
          %s182 = smul.addr %s181, 8
          %s183 = scalar_lea.vmem [#allocation6], %s182
          %s185 = ssub.s32 128, 128
          %186 = vsyncadd %s180, %s185
          %s187 = smul.addr %s22, 128
          %s188 = scalar_lea.hbm %s1, %s187
          %s190 = sshll.u32 %s183, 4
          %s191 = int_to_ptr.vmem [resolvable:$true] %s190
          %193 = dma.hbm_to_vmem [thread:$0]  %s188, 128, %s191, %s180
        $region28: #{reference_infonce.1} parent=19 // pred_fallthru
          _
      $region20: #{reference_infonce.1} parent=5 // pred_fallthru
        _
      %p194 = scmp.le.s32.totalorder 1, %s15
      %p195 = scmp.lt.s32.totalorder %s15, 3
      %p196 = pnand %p194, %p195
      %p197 = pneg %p196
      // Predicated region
      $region29: #{reference_infonce.1} parent=5 // pred_check
        _
      $region30: #{reference_infonce.1} parent=5 // pred_check_branch
        %199 = sbr.rel (%p196) target = $region32
      $region31: #{reference_infonce.1} parent=5 // pred_region
        %s200 = ssub.s32 %s15, 1
        %s201 = sand.u32 %s40, 1
        %s202 = scalar_lea.sflag [#allocation5], %s201
        %s203 = sand.u32 %s40, 1
        %s204 = smul.addr %s203, 8
        %s205 = scalar_lea.vmem [#allocation4], %s204
        // Predicated region
        $region33: #{reference_infonce.1} parent=31 // pred_check
          %p206 = pneg %p53
        $region34: #{reference_infonce.1} parent=31 // pred_check_branch
          %208 = sbr.rel (%p206) target = $region36
        $region35: #{reference_infonce.1} parent=31 // pred_region
          %209 = dma.done %s202, 128
        $region36: #{reference_infonce.1} parent=31 // pred_fallthru
          _
        %s210 = sand.u32 %s20, 1
        %s211 = scalar_lea.sflag [#allocation7], %s210
        %s212 = sand.u32 %s66, 1
        %s213 = smul.addr %s212, 8
        %s214 = scalar_lea.vmem [#allocation6], %s213
        // Predicated region
        $region37: #{reference_infonce.1} parent=31 // pred_check
          %p215 = pneg %p79
        $region38: #{reference_infonce.1} parent=31 // pred_check_branch
          %217 = sbr.rel (%p215) target = $region40
        $region39: #{reference_infonce.1} parent=31 // pred_region
          %218 = dma.done %s211, 128
        $region40: #{reference_infonce.1} parent=31 // pred_fallthru
          _
        // Predicated region
        $region41: #{reference_infonce.1} parent=31 // pred_check
          %p219 = pneg %p100
        $region42: #{reference_infonce.1} parent=31 // pred_check_branch
          %221 = sbr.rel (%p219) target = $region44
        $region43: #{reference_infonce.1} parent=31 // pred_region
          %222 = dma.done [#allocation7], 384
        $region44: #{reference_infonce.1} parent=31 // pred_fallthru
          _
        %s223 = sand.u32 %s40, 1
        %s224 = scalar_lea.sflag [#allocation5], %s223
        %s225 = sand.u32 %s40, 1
        %s226 = smul.addr %s225, 8
        %s227 = scalar_lea.vmem [#allocation4], %s226
        %p228 = pneg %p53
        %p229 = pneg %p50
        %s230 = sand.u32 %s20, 1
        %s231 = scalar_lea.sflag [#allocation7], %s230
        %s232 = sand.u32 %s66, 1
        %s233 = smul.addr %s232, 8
        %s234 = scalar_lea.vmem [#allocation6], %s233
        %p235 = pneg %p79
        %p236 = pneg %p76
        %p237 = pneg %p100
        %p238 = pneg %p97
        %p239 = pneg %p126
        %p240 = pneg %p123
        %p241 = scmp.lt.s32.totalorder %s24, 1
        %s242 = scalar_select %p241, %s24, 1
        %s243 = smul.addr %s242, 8
        %s244 = scalar_lea.vmem %s3, %s243
        %p245 = scmp.lt.s32.totalorder %s24, 1
        %s246 = scalar_select %p245, %s24, 1
        %s247 = smul.addr %s246, 8
        %s248 = scalar_lea.vmem %s3, %s247
        %p249 = scmp.eq.s32.totalorder %s25, 0
        // Predicated region
        $region45: #{reference_infonce.1} parent=31 // pred_check
          %p250 = pneg %p249
        $region46: #{reference_infonce.1} parent=31 // pred_check_branch
          %252 = sbr.rel (%p250) target = $region48
        $region47: #{reference_infonce.1} parent=31 // pred_region
          %vm253 = vcmask 7168
          %254 = vst.msk [vmem:[#allocation2] sm:$0xff] %vm253, -inf
          %255 = vst.msk [vmem:[#allocation3] sm:$0xff] %vm253, 0.0
        $region48: #{reference_infonce.1} parent=31 // pred_fallthru
          _
        %v256 = vld [vmem:[%s205] sm:$0xff]
        %v257 = vmul.f32 %v256, 2.0
        %s258 = smul.u32 %s25, 24
        %s259 = scalar_lea.vmem [#allocation8], %s258
        %v260 = vld [vmem:[%s259] sm:$0xff]
        %v261 = vld [vmem:[%s259 + $0x8] sm:$0xff]
        %v262 = vld [vmem:[%s259 + $0x10] sm:$0xff]
        %vm263 = vcmask 261120
        %v265 = vsel %vm263, %v257, 0
        %v268 = vsel %vm263, %v260, 0
        %v271 = vsel %vm263, %v261, 0
        %v274 = vsel %vm263, %v262, 0
        %276 = vmatprep.subr.mxu0 0.0
        %277 = vmatpush1.xpose.msra.mxu0 %v268
        %278 = vmatprep.subr.mxu0 0.0
        %279 = vmatpush1.xpose.msra.mxu0 %v271
        %280 = vmatprep.subr.mxu0 0.0
        %281 = vmatpush1.xpose.msra.mxu0 %v274
        %282 = vmatprep.subr.mxu0 0.0
        %283 = vmatpush1.xpose.msra.mxu0 0.0
        %284 = vmatprep.subr.mxu0 0.0
        %285 = vmatpush1.xpose.msra.mxu0 0.0
        %286 = vmatprep.subr.mxu0 0.0
        %287 = vmatpush1.xpose.msra.mxu0 0.0
        %288 = vmatprep.subr.mxu0 0.0
        %289 = vmatpush1.xpose.msra.mxu0 0.0
        %290 = vmatprep.subr.mxu0 0.0
        %291 = vmatpush1.xpose.msra.mxu0 0.0
        %292 = vmatprep.subr.mxu0 0.0
        %293 = vmatpush1.xpose.msra.mxu0 0.0
        %294 = vmatprep.subr.mxu0 0.0
        %295 = vmatpush1.xpose.msra.mxu0 0.0
        %296 = vmatprep.subr.mxu0 0.0
        %297 = vmatpush1.xpose.msra.mxu0 0.0
        %298 = vmatprep.subr.mxu0 0.0
        %299 = vmatpush1.xpose.msra.mxu0 0.0
        %300 = vmatprep.subr.mxu0 0.0
        %301 = vmatpush1.xpose.msra.mxu0 0.0
        %302 = vmatprep.subr.mxu0 0.0
        %303 = vmatpush1.xpose.msra.mxu0 0.0
        %304 = vmatprep.subr.mxu0 0.0
        %305 = vmatpush1.xpose.msra.mxu0 0.0
        %306 = vmatprep.subr.mxu0 0.0
        %307 = vmatpush1.xpose.msra.mxu0 0.0
        %308 = vmatprep.subr.mxu0 0.0
        %309 = vmatpush1.xpose.msra.mxu0 0.0
        %310 = vmatprep.subr.mxu0 0.0
        %311 = vmatpush1.xpose.msra.mxu0 0.0
        %312 = vmatprep.subr.mxu0 0.0
        %313 = vmatpush1.xpose.msra.mxu0 0.0
        %314 = vmatprep.subr.mxu0 0.0
        %315 = vmatpush1.xpose.msra.mxu0 0.0
        %316 = vmatprep.subr.mxu0 0.0
        %317 = vmatpush1.xpose.msra.mxu0 0.0
        %318 = vmatprep.subr.mxu0 0.0
        %319 = vmatpush1.xpose.msra.mxu0 0.0
        %320 = vmatprep.subr.mxu0 0.0
        %321 = vmatpush1.xpose.msra.mxu0 0.0
        %322 = vmatprep.subr.mxu0 0.0
        %323 = vmatpush1.xpose.msra.mxu0 0.0
        %324 = vmatprep.subr.mxu0 0.0
        %325 = vmatpush1.xpose.msra.mxu0 0.0
        %326 = vmatprep.subr.mxu0 0.0
        %327 = vmatpush1.xpose.msra.mxu0 0.0
        %328 = vmatprep.subr.mxu0 0.0
        %329 = vmatpush1.xpose.msra.mxu0 0.0
        %330 = vmatprep.subr.mxu0 0.0
        %331 = vmatpush1.xpose.msra.mxu0 0.0
        %332 = vmatprep.subr.mxu0 0.0
        %333 = vmatpush1.xpose.msra.mxu0 0.0
        %334 = vmatprep.subr.mxu0 0.0
        %335 = vmatpush1.xpose.msra.mxu0 0.0
        %336 = vmatprep.subr.mxu0 0.0
        %337 = vmatpush1.xpose.msra.mxu0 0.0
        %338 = vmatprep.subr.mxu0 0.0
        %339 = vmatpush1.xpose.msra.mxu0 0.0
        %340 = vmatprep.mubr.f32.mxu0 0.0
        %341 = vmatmul.mubr.f32.gmra.mrb[0].mxu0 %v265
        %v342 = vpop.f32.mrb[0].mxu0
        %v343 = vadd.f32 0.0, %v342
        %v344 = vpop.f32.mrb[0].mxu0
        %345 = vdwg.mxu0
        %v346 = vld [vmem:[#allocation2] sm:$0xff]
        %vm347 = vcmask 195584
        %v348 = vsel %vm347, %v343, -inf
        %349 = vmax.xlane.f32.xlu0 %v348
        %v350 = vpop.xlane.xlu0 %349
        %v351 = vmax.f32 %v346, %v350
        %v352 = vsub.f32 %v346, %v351
        %v353 = vmul.f32 %v352, 1.442695
        %v354 = vpow.pop %v353
        %356 = vset.pattern.permute.xlu0 0
        %357 = vperm.xlu0 %356, %v351
        %v358 = vpop.permute.xlu0 %357
        %v360 = vsub.f32 %v343, %v358
        %v361 = vmul.f32 %v360, 1.442695
        %v362 = vpow.pop %v361
        %v363 = vld [vmem:[#allocation3] sm:$0xff]
        %v364 = vmul.f32 %v354, %v363
        %v365 = vsel %vm347, %v362, 0.0
        %366 = vadd.xlane.f32.xlu0 %v365
        %v367 = vpop.xlane.xlu0 %366
        %v368 = vadd.f32 %v364, %v367
        %vm369 = vcmask 7168
        %370 = vst.msk [vmem:[#allocation3] sm:$0xff] %vm369, %v368
        %371 = vst.msk [vmem:[#allocation2] sm:$0xff] %vm369, %v351
        // Predicated region
        $region49: #{reference_infonce.1} parent=31 // pred_check
          %p372 = pneg %p249
        $region50: #{reference_infonce.1} parent=31 // pred_check_branch
          %374 = sbr.rel (%p372) target = $region52
        $region51: #{reference_infonce.1} parent=31 // pred_region
          %v375 = vld [vmem:[%s214] sm:$0xff]
          %v376 = vmul.f32 %v257, %v375
          %v377 = vsel %vm263, %v376, 0.0
          %378 = vadd.xlane.f32.xlu0 %v377
          %v379 = vpop.xlane.xlu0 %378
          %v380 = vld [vmem:[#allocation2] sm:$0xff]
          %v381 = vlaneseq
          %v382 = vshrl.u32 %v381, 7
          %s383 = smul.u32 %s24, 8
          %v384 = vstv %s383
          %v385 = vadd.s32 %v382, %v384
          %vm386 = vcmp.lt.s32.totalorder %v385, 16
          %v387 = vsub.f32 %v380, %v379
          %v388 = vsel %vm386, %v387, 0.0
          %v389 = vsel %vm369, %v388, 0.0
          %390 = vadd.xlane.f32.xlu0 %v389
          %v391 = vpop.xlane.xlu0 %390
          %v392 = vrot.slane %v391, 4
          %v393 = vadd.f32 %v391, %v392
          %v394 = vrot.slane %v393, 2
          %v395 = vadd.f32 %v393, %v394
          %v396 = vrot.slane %v395, 1
          %v397 = vadd.f32 %v395, %v396
          %s398 = vtos %v397
          %v399 = vld [vmem:[#allocation3] sm:$0xff]
          %v400 = vlog2.pop %v399
          %v401 = vmul.f32 %v400, 0.6931472
          %v402 = vsel %vm386, %v401, 0.0
          %v403 = vsel %vm369, %v402, 0.0
          %404 = vadd.xlane.f32.xlu0 %v403
          %v405 = vpop.xlane.xlu0 %404
          %v406 = vrot.slane %v405, 4
          %v407 = vadd.f32 %v405, %v406
          %v408 = vrot.slane %v407, 2
          %v409 = vadd.f32 %v407, %v408
          %v410 = vrot.slane %v409, 1
          %v411 = vadd.f32 %v409, %v410
          %s412 = vtos %v411
          %v413 = vlaneseq
          %v414 = vand.u32 %v413, 127
          %vm415 = vcmp.eq.s32.totalorder %v382, 0
          %vm416 = vcmp.eq.s32.totalorder %v414, 0
          %vm417 = vmand %vm415, %vm416
          %vm418 = vcmp.eq.s32.totalorder %v414, 1
          %vm419 = vmand %vm415, %vm418
          %v420 = vstv %s412
          %v421 = vsel %vm419, %v420, 0.0
          %v422 = vstv %s398
          %v423 = vsel %vm417, %v422, %v421
          %424 = vst [vmem:[%s248] sm:$0xff] %v423
        $region52: #{reference_infonce.1} parent=31 // pred_fallthru
          _
        %p425 = scmp.lt.s32.totalorder %s24, 1
        %s426 = scalar_select %p425, %s24, 1
        %s427 = smul.addr %s426, 8
        %s428 = scalar_lea.vmem %s3, %s427
        // Predicated region
        $region53: #{reference_infonce.1} parent=31 // pred_check
          %p429 = pneg %p123
        $region54: #{reference_infonce.1} parent=31 // pred_check_branch
          %431 = sbr.rel (%p429) target = $region56
        $region55: #{reference_infonce.1} parent=31 // pred_region
          _
        $region56: #{reference_infonce.1} parent=31 // pred_fallthru
          _
      $region32: #{reference_infonce.1} parent=5 // pred_fallthru
        _
      %p432 = scmp.le.s32.totalorder 2, %s15
      // Predicated region
      $region57: #{reference_infonce.1} parent=5 // pred_check
        %p433 = pneg %p432
      $region58: #{reference_infonce.1} parent=5 // pred_check_branch
        %435 = sbr.rel (%p433) target = $region60
      $region59: #{reference_infonce.1} parent=5 // pred_region
        %s436 = ssub.s32 %s15, 2
        // Predicated region
        $region61: #{reference_infonce.1} parent=59 // pred_check
          %p437 = pneg %p129
        $region62: #{reference_infonce.1} parent=59 // pred_check_branch
          %439 = sbr.rel (%p437) target = $region64
        $region63: #{reference_infonce.1} parent=59 // pred_region
          %p440 = scmp.lt.s32.totalorder %s26, 1
          %s441 = scalar_select %p440, %s26, 1
          %s442 = smul.addr %s441, 8
          %s443 = scalar_lea.vmem %s3, %s442
        $region64: #{reference_infonce.1} parent=59 // pred_fallthru
          _
      $region60: #{reference_infonce.1} parent=5 // pred_fallthru
        _
    $region6: #{reference_infonce.1} parent=1 // loop_footer
      %s19 = sadd.s32 1, %s15
    $region7: #{reference_infonce.1} parent=1 // loop_footer_branch
      %14 = sbr.rel target = $region3
    $region8: #{reference_infonce.1} parent=1 // loop_exit
      _
    %444 = vsyncpa [#allocation5], 1
    %s445 = scalar_lea.sflag [#allocation5], 1
    %446 = vsyncpa %s445, 1
    %447 = vsyncpa [#allocation7], 1
    %s448 = scalar_lea.sflag [#allocation7], 1
    %449 = vsyncpa %s448, 1

</llo_original>
